<compile_context>
chip_gen: v7x
topology: tpu7x:2x2x1
jax: 0.10.0
libtpu: 0.0.40
codegen_flags: <defaults>
</compile_context>

<pallas_src>
import jax
import jax.numpy as jnp
from jax.experimental import pallas as pl
from jax.experimental.pallas import tpu as pltpu


def _round_up(v, m):
    return ((v + m - 1) // m) * m


# -----------------------------------------------------------------------------
# Kernel: fused 3-layer MLP (Linear -> ReLU -> Linear -> ReLU -> Linear(.,1))
# -----------------------------------------------------------------------------
def _critic_decoder_kernel(x_ref, w0_ref, b0_ref, w1_ref, b1_ref,
                           w2_ref, b2_ref, o_ref):
    mxu_dtype = w0_ref.dtype   # bf16 by default

    # layer 0: Linear(C, C) + ReLU  (bf16 MXU inputs, f32 accumulate/epilogue)
    h = jnp.dot(x_ref[...].astype(mxu_dtype), w0_ref[...],
                preferred_element_type=jnp.float32)
    h = jnp.maximum(h + b0_ref[...], 0.0)

    # layer 1: Linear(C, C) + ReLU
    h = jnp.dot(h.astype(mxu_dtype), w1_ref[...],
                preferred_element_type=jnp.float32)
    h = jnp.maximum(h + b1_ref[...], 0.0)

    # layer 2: Linear(C, 1), computed as (1,C) . (tile,C)^T -> (1, tile) so the
    # result is already a lane-dense row (no (tile,1) masked store).
    out_row = jax.lax.dot_general(
        w2_ref[...], h.astype(mxu_dtype),
        dimension_numbers=(((1,), (1,)), ((), ())),
        preferred_element_type=jnp.float32)
    out_row = out_row + b2_ref[0, 0]          # scalar bias from SMEM

    o_ref[...] = out_row.astype(o_ref.dtype)


# -----------------------------------------------------------------------------
# Tiling: ~2 MiB of x per grid step, balanced tiles, >= 2 tiles for large n.
# -----------------------------------------------------------------------------
def _compute_row_tile(n, C, x_itemsize, *, target_bytes=2 << 20,
                      min_rows=512, max_rows=8192):
    n = max(int(n), 1)
    if n <= 128:
        # Tiny input: a single 8-aligned block (last dim C spans the full
        # array, so the (8,128) constraint is satisfied).
        return _round_up(n, 8), 1

    # Target rows so each x block is ~target_bytes of HBM traffic.
    rows_for_target = max(target_bytes // max(C * x_itemsize, 1), 1)
    tile_target = int(min(max_rows, max(min_rows, rows_for_target)))
    tile_target = _round_up(tile_target, 128)

    num_tiles = pl.cdiv(n, tile_target)
    if n >= 256:
        num_tiles = max(num_tiles, 2)   # keep both v7x TensorCores busy
    # Rebalance so the last block is not nearly empty; keep 128-multiple tiles
    # (clean MXU passes on v5e, unmasked lane-dense output stores).
    tile = _round_up(pl.cdiv(n, num_tiles), 128)
    num_tiles = pl.cdiv(n, tile)
    return tile, num_tiles


def _build_forward(n_pad, tile, num_tiles, C, x_dtype, w_dtype,
                   single_buffer_weights):
    if single_buffer_weights:
        # Constant-index (resident) operands hold one VMEM buffer, not two.
        def wspec(shape):
            return pl.BlockSpec(shape, lambda i: (0, 0),
                                pipeline_mode=pl.Buffered(1))
    else:
        def wspec(shape):
            return pl.BlockSpec(shape, lambda i: (0, 0))

    # VMEM budget from the actual footprint, capped for v7x's 64 MiB VMEM.
    x_itemsize = jnp.dtype(x_dtype).itemsize
    w_itemsize = jnp.dtype(w_dtype).itemsize
    wb_bufs = 1 if single_buffer_weights else 2
    footprint = (2 * tile * C * x_itemsize                # x stream (2 bufs)
                 + 2 * tile * 4                           # lane-dense out (2 bufs)
                 + wb_bufs * (2 * C * C * w_itemsize      # w0, w1
                              + 2 * C * 4                 # b0, b1 (f32)
                              + C * w_itemsize))          # w2 row
    vmem_limit = int(min(48 << 20, max(32 << 20, footprint * 5 // 4 + (4 << 20))))
    # TODO(synk): for C large enough that both (C,C) weights cannot stay
    # resident single-buffered under ~48 MiB (C >~ 3.4K in bf16), add a
    # hidden-dim reduction grid axis ("arbitrary") with tiled weights and an
    # f32 accumulator instead of forcing full weights into VMEM.

    return pl.pallas_call(
        _critic_decoder_kernel,
        out_shape=jax.ShapeDtypeStruct((1, n_pad), jnp.float32),
        grid_spec=pltpu.PrefetchScalarGridSpec(
            num_scalar_prefetch=0,
            grid=(num_tiles,),
            in_specs=[
                pl.BlockSpec((tile, C), lambda i: (i, 0)),          # x rows
                wspec((C, C)),                                      # w0 (resident)
                wspec((1, C)),                                      # b0
                wspec((C, C)),                                      # w1 (resident)
                wspec((1, C)),                                      # b1
                wspec((1, C)),                                      # w2 row
                pl.BlockSpec(memory_space=pltpu.MemorySpace.SMEM),  # b2 scalar
            ],
            out_specs=pl.BlockSpec((1, tile), lambda i: (0, i)),    # lane-dense
        ),
        compiler_params=pltpu.CompilerParams(
            dimension_semantics=("parallel",),     # row tiles shard across TCs
            vmem_limit_bytes=vmem_limit,
        ),
    )


def critic_decoder_forward(x, params):
    """CriticDecoder forward.

    x: (..., C) array (f32 or bf16 -- bf16 is consumed as-is, no extra cast)
    params: dict with w0 (C,C), b0 (1,C), w1 (C,C), b1 (1,C), w2 (1,C), b2 (1,1)
    returns: flat (prod(leading dims),) float32   (== torch .view(-1))
    """
    C = x.shape[-1]
    x2d = x.reshape(-1, C)
    n = x2d.shape[0]

    tile, num_tiles = _compute_row_tile(n, C, jnp.dtype(x2d.dtype).itemsize)
    n_pad = num_tiles * tile

    args = (x2d, params["w0"], params["b0"], params["w1"], params["b1"],
            params["w2"], params["b2"])
    try:
        out = _build_forward(n_pad, tile, num_tiles, C, x2d.dtype,
                             params["w0"].dtype, True)(*args)
    except Exception:
        # Fallback: this Mosaic build rejects single-buffered resident blocks;
        # use default double-buffering (costs 2x weight VMEM, still correct).
        out = _build_forward(n_pad, tile, num_tiles, C, x2d.dtype,
                             params["w0"].dtype, False)(*args)

    # Only the first n lanes are valid; padded tail rows are never consumed.
    return out[0, :n]   # == torch .view(-1)


# -----------------------------------------------------------------------------
# Parameter init (PyTorch nn.Linear style: U(-1/sqrt(fan_in), 1/sqrt(fan_in))).
# w0/w1 stored (in, out) so the kernel does h @ W; w2 stored as a (1, C) row
# (== torch's (out=1, in=C) weight). Matmul weights in bf16, biases in f32.
# -----------------------------------------------------------------------------
def init_params(key, channels, weight_dtype=jnp.bfloat16):
    ks = jax.random.split(key, 6)
    bound = 1.0 / float(channels) ** 0.5
    u = lambda k, shape: jax.random.uniform(k, shape, jnp.float32, -bound, bound)
    return {
        "w0": u(ks[0], (channels, channels)).astype(weight_dtype),
        "b0": u(ks[1], (1, channels)),
        "w1": u(ks[2], (channels, channels)).astype(weight_dtype),
        "b1": u(ks[3], (1, channels)),
        "w2": u(ks[4], (1, channels)).astype(weight_dtype),
        "b2": u(ks[5], (1, 1)),
    }


def reference_forward(x, params):
    """Pure-JAX reference using the same mixed precision as the kernel
    (bf16 MXU inputs, f32 accumulation / bias / ReLU)."""
    wdt = params["w0"].dtype
    h = x.reshape(-1, x.shape[-1]).astype(jnp.float32)
    h = jnp.dot(h.astype(wdt), params["w0"], preferred_element_type=jnp.float32)
    h = jnp.maximum(h + params["b0"], 0.0)
    h = jnp.dot(h.astype(wdt), params["w1"], preferred_element_type=jnp.float32)
    h = jnp.maximum(h + params["b1"], 0.0)
    out = jnp.dot(h.astype(wdt), params["w2"].T,
                  preferred_element_type=jnp.float32) + params["b2"][0, 0]
    return out.reshape(-1)


if __name__ == "__main__":
    # config: decoder_layers=3, channels=32, nonlinearity='relu'
    channels = 32
    batch, seq = 2, 8      # tokens entering the critic decoder

    key = jax.random.PRNGKey(0)
    k_param, k_x, k_x2 = jax.random.split(key, 3)
    params = init_params(k_param, channels)

    # Small shape matching the module's use (single-tile path).
    x = jax.random.normal(k_x, (batch, seq, channels), dtype=jnp.float32)
    out = jax.block_until_ready(critic_decoder_forward(x, params))
    ref = reference_forward(x, params)
    assert out.shape == (batch * seq,), out.shape
    err = float(jnp.max(jnp.abs(out - ref)))
    assert err < 1e-2, f"max abs err {err}"

    # Multi-tile path (balanced 128-multiple tiles, partial last block,
    # lane-dense output writeback, padded tail sliced off).
    x_big = jax.random.normal(k_x2, (600, channels), dtype=jnp.float32)
    out_big = jax.block_until_ready(critic_decoder_forward(x_big, params))
    ref_big = reference_forward(x_big, params)
    assert out_big.shape == (600,), out_big.shape
    err_big = float(jnp.max(jnp.abs(out_big - ref_big)))
    assert err_big < 1e-2, f"max abs err {err_big}"

    print("KERNEL_OK")
</pallas_src>

<mosaic_0001>
module attributes {stable_mosaic.version = 11 : i64} {
  func.func @_critic_decoder_kernel(%arg0: i32, %arg1: memref<16x32xf32, #tpu.memory_space<vmem>>, %arg2: memref<32x32xbf16, #tpu.memory_space<vmem>>, %arg3: memref<1x32xf32, #tpu.memory_space<vmem>>, %arg4: memref<32x32xbf16, #tpu.memory_space<vmem>>, %arg5: memref<1x32xf32, #tpu.memory_space<vmem>>, %arg6: memref<1x32xbf16, #tpu.memory_space<vmem>>, %arg7: memref<1x1xf32, #tpu.memory_space<smem>>, %arg8: memref<1x16xf32, #tpu.memory_space<vmem>>) attributes {dimension_semantics = [#tpu.dimension_semantics<parallel>], iteration_bounds = array<i64: 1>, scalar_prefetch = 0 : i64, scratch_operands = 0 : i64, tpu.core_type = #tpu.core_type<tc>, window_params = [{transform_indices = @transform_0, window_bounds = array<i64: 16, 32>}, {pipeline_mode = #tpu.pipeline_mode<synchronous>, transform_indices = @transform_1, window_bounds = array<i64: 32, 32>}, {pipeline_mode = #tpu.pipeline_mode<synchronous>, transform_indices = @transform_2, window_bounds = array<i64: 1, 32>}, {pipeline_mode = #tpu.pipeline_mode<synchronous>, transform_indices = @transform_3, window_bounds = array<i64: 32, 32>}, {pipeline_mode = #tpu.pipeline_mode<synchronous>, transform_indices = @transform_4, window_bounds = array<i64: 1, 32>}, {pipeline_mode = #tpu.pipeline_mode<synchronous>, transform_indices = @transform_5, window_bounds = array<i64: 1, 32>}, {transform_indices = @transform_6, window_bounds = array<i64: 1, 1>}, {transform_indices = @transform_7, window_bounds = array<i64: 1, 16>}]} {
    %c0 = arith.constant 0 : index
    %c0_0 = arith.constant 0 : index
    %0 = vector.load %arg1[%c0, %c0_0] : memref<16x32xf32, #tpu.memory_space<vmem>>, vector<16x32xf32>
    %1 = arith.truncf %0 : vector<16x32xf32> to vector<16x32xbf16>
    %c0_1 = arith.constant 0 : index
    %c0_2 = arith.constant 0 : index
    %2 = vector.load %arg2[%c0_1, %c0_2] : memref<32x32xbf16, #tpu.memory_space<vmem>>, vector<32x32xbf16>
    %cst = arith.constant dense<0.000000e+00> : vector<16x32xf32>
    %3 = tpu.matmul %1, %2, %cst {dimension_numbers = #tpu.dot_dimension_numbers<[1], [0], [0], [1], [0, 0, 1, 1], [], []>} : vector<16x32xbf16>, vector<32x32xbf16>, vector<16x32xf32> -> vector<16x32xf32>
    %c0_3 = arith.constant 0 : index
    %c0_4 = arith.constant 0 : index
    %4 = vector.load %arg3[%c0_3, %c0_4] : memref<1x32xf32, #tpu.memory_space<vmem>>, vector<1x32xf32>
    %5 = vector.broadcast %4 : vector<1x32xf32> to vector<16x32xf32>
    %6 = arith.addf %3, %5 : vector<16x32xf32>
    %cst_5 = arith.constant 0.000000e+00 : f32
    %7 = vector.broadcast %cst_5 : f32 to vector<16x32xf32>
    %8 = arith.maximumf %6, %7 : vector<16x32xf32>
    %9 = arith.truncf %8 : vector<16x32xf32> to vector<16x32xbf16>
    %c0_6 = arith.constant 0 : index
    %c0_7 = arith.constant 0 : index
    %10 = vector.load %arg4[%c0_6, %c0_7] : memref<32x32xbf16, #tpu.memory_space<vmem>>, vector<32x32xbf16>
    %cst_8 = arith.constant dense<0.000000e+00> : vector<16x32xf32>
    %11 = tpu.matmul %9, %10, %cst_8 {dimension_numbers = #tpu.dot_dimension_numbers<[1], [0], [0], [1], [0, 0, 1, 1], [], []>} : vector<16x32xbf16>, vector<32x32xbf16>, vector<16x32xf32> -> vector<16x32xf32>
    %c0_9 = arith.constant 0 : index
    %c0_10 = arith.constant 0 : index
    %12 = vector.load %arg5[%c0_9, %c0_10] : memref<1x32xf32, #tpu.memory_space<vmem>>, vector<1x32xf32>
    %13 = vector.broadcast %12 : vector<1x32xf32> to vector<16x32xf32>
    %14 = arith.addf %11, %13 : vector<16x32xf32>
    %cst_11 = arith.constant 0.000000e+00 : f32
    %15 = vector.broadcast %cst_11 : f32 to vector<16x32xf32>
    %16 = arith.maximumf %14, %15 : vector<16x32xf32>
    %c0_12 = arith.constant 0 : index
    %c0_13 = arith.constant 0 : index
    %17 = vector.load %arg6[%c0_12, %c0_13] : memref<1x32xbf16, #tpu.memory_space<vmem>>, vector<1x32xbf16>
    %18 = arith.truncf %16 : vector<16x32xf32> to vector<16x32xbf16>
    %cst_14 = arith.constant dense<0.000000e+00> : vector<1x16xf32>
    %19 = tpu.matmul %17, %18, %cst_14 {dimension_numbers = #tpu.dot_dimension_numbers<[1], [1], [0], [0], [0, 0, 1, 0], [], []>} : vector<1x32xbf16>, vector<16x32xbf16>, vector<1x16xf32> -> vector<1x16xf32>
    %c0_15 = arith.constant 0 : index
    %c0_16 = arith.constant 0 : index
    %20 = memref.load %arg7[%c0_15, %c0_16] : memref<1x1xf32, #tpu.memory_space<smem>>
    %21 = vector.broadcast %20 : f32 to vector<1x16xf32>
    %22 = arith.addf %19, %21 : vector<1x16xf32>
    %c0_17 = arith.constant 0 : index
    %c0_18 = arith.constant 0 : index
    %23 = vector.load %arg8[%c0_17, %c0_18] : memref<1x16xf32, #tpu.memory_space<vmem>>, vector<1x16xf32>
    tpu.vector_store %arg8[%c0_17, %c0_18], %22 {strides = array<i32>} : memref<1x16xf32, #tpu.memory_space<vmem>>, vector<1x16xf32>,
    return
  }
  func.func @transform_0(%arg0: i32) -> (i32, i32) {
    %c0_i32 = arith.constant 0 : i32
    %c0_i32_0 = arith.constant 0 : i32
    return %arg0, %c0_i32 : i32, i32
  }
  func.func @transform_1(%arg0: i32) -> (i32, i32) {
    %c0_i32 = arith.constant 0 : i32
    %c0_i32_0 = arith.constant 0 : i32
    %c0_i32_1 = arith.constant 0 : i32
    return %c0_i32, %c0_i32_0 : i32, i32
  }
  func.func @transform_2(%arg0: i32) -> (i32, i32) {
    %c0_i32 = arith.constant 0 : i32
    %c0_i32_0 = arith.constant 0 : i32
    %c0_i32_1 = arith.constant 0 : i32
    return %c0_i32, %c0_i32_0 : i32, i32
  }
  func.func @transform_3(%arg0: i32) -> (i32, i32) {
    %c0_i32 = arith.constant 0 : i32
    %c0_i32_0 = arith.constant 0 : i32
    %c0_i32_1 = arith.constant 0 : i32
    return %c0_i32, %c0_i32_0 : i32, i32
  }
  func.func @transform_4(%arg0: i32) -> (i32, i32) {
    %c0_i32 = arith.constant 0 : i32
    %c0_i32_0 = arith.constant 0 : i32
    %c0_i32_1 = arith.constant 0 : i32
    return %c0_i32, %c0_i32_0 : i32, i32
  }
  func.func @transform_5(%arg0: i32) -> (i32, i32) {
    %c0_i32 = arith.constant 0 : i32
    %c0_i32_0 = arith.constant 0 : i32
    %c0_i32_1 = arith.constant 0 : i32
    return %c0_i32, %c0_i32_0 : i32, i32
  }
  func.func @transform_6(%arg0: i32) -> (i32, i32) {
    %c0_i32 = arith.constant 0 : i32
    %c0_i32_0 = arith.constant 0 : i32
    %c0_i32_1 = arith.constant 0 : i32
    return %c0_i32, %c0_i32_0 : i32, i32
  }
  func.func @transform_7(%arg0: i32) -> (i32, i32) {
    %c0_i32 = arith.constant 0 : i32
    %c0_i32_0 = arith.constant 0 : i32
    return %c0_i32, %arg0 : i32, i32
  }
}

module attributes {stable_mosaic.version = 11 : i64} {
  func.func @_critic_decoder_kernel(%arg0: i32, %arg1: memref<16x32xf32, #tpu.memory_space<vmem>>, %arg2: memref<32x32xbf16, #tpu.memory_space<vmem>>, %arg3: memref<1x32xf32, #tpu.memory_space<vmem>>, %arg4: memref<32x32xbf16, #tpu.memory_space<vmem>>, %arg5: memref<1x32xf32, #tpu.memory_space<vmem>>, %arg6: memref<1x32xbf16, #tpu.memory_space<vmem>>, %arg7: memref<1x1xf32, #tpu.memory_space<smem>>, %arg8: memref<1x16xf32, #tpu.memory_space<vmem>>) attributes {dimension_semantics = [#tpu.dimension_semantics<parallel>], iteration_bounds = array<i64: 1>, scalar_prefetch = 0 : i64, scratch_operands = 0 : i64, tpu.core_type = #tpu.core_type<tc>, window_params = [{transform_indices = @transform_0, window_bounds = array<i64: 16, 32>}, {pipeline_mode = #tpu.pipeline_mode<synchronous>, transform_indices = @transform_1, window_bounds = array<i64: 32, 32>}, {pipeline_mode = #tpu.pipeline_mode<synchronous>, transform_indices = @transform_2, window_bounds = array<i64: 1, 32>}, {pipeline_mode = #tpu.pipeline_mode<synchronous>, transform_indices = @transform_3, window_bounds = array<i64: 32, 32>}, {pipeline_mode = #tpu.pipeline_mode<synchronous>, transform_indices = @transform_4, window_bounds = array<i64: 1, 32>}, {pipeline_mode = #tpu.pipeline_mode<synchronous>, transform_indices = @transform_5, window_bounds = array<i64: 1, 32>}, {transform_indices = @transform_6, window_bounds = array<i64: 1, 1>}, {transform_indices = @transform_7, window_bounds = array<i64: 1, 16>}]} {
    %c0 = arith.constant 0 : index
    %c0_0 = arith.constant 0 : index
    %0 = vector.load %arg1[%c0, %c0_0] : memref<16x32xf32, #tpu.memory_space<vmem>>, vector<16x32xf32>
    %1 = arith.truncf %0 : vector<16x32xf32> to vector<16x32xbf16>
    %c0_1 = arith.constant 0 : index
    %c0_2 = arith.constant 0 : index
    %2 = vector.load %arg2[%c0_1, %c0_2] : memref<32x32xbf16, #tpu.memory_space<vmem>>, vector<32x32xbf16>
    %cst = arith.constant dense<0.000000e+00> : vector<16x32xf32>
    %3 = tpu.matmul %1, %2, %cst {dimension_numbers = #tpu.dot_dimension_numbers<[1], [0], [0], [1], [0, 0, 1, 1], [], []>} : vector<16x32xbf16>, vector<32x32xbf16>, vector<16x32xf32> -> vector<16x32xf32>
    %c0_3 = arith.constant 0 : index
    %c0_4 = arith.constant 0 : index
    %4 = vector.load %arg3[%c0_3, %c0_4] : memref<1x32xf32, #tpu.memory_space<vmem>>, vector<1x32xf32>
    %5 = vector.broadcast %4 : vector<1x32xf32> to vector<16x32xf32>
    %6 = arith.addf %3, %5 : vector<16x32xf32>
    %cst_5 = arith.constant 0.000000e+00 : f32
    %7 = vector.broadcast %cst_5 : f32 to vector<16x32xf32>
    %8 = arith.maximumf %6, %7 : vector<16x32xf32>
    %9 = arith.truncf %8 : vector<16x32xf32> to vector<16x32xbf16>
    %c0_6 = arith.constant 0 : index
    %c0_7 = arith.constant 0 : index
    %10 = vector.load %arg4[%c0_6, %c0_7] : memref<32x32xbf16, #tpu.memory_space<vmem>>, vector<32x32xbf16>
    %cst_8 = arith.constant dense<0.000000e+00> : vector<16x32xf32>
    %11 = tpu.matmul %9, %10, %cst_8 {dimension_numbers = #tpu.dot_dimension_numbers<[1], [0], [0], [1], [0, 0, 1, 1], [], []>} : vector<16x32xbf16>, vector<32x32xbf16>, vector<16x32xf32> -> vector<16x32xf32>
    %c0_9 = arith.constant 0 : index
    %c0_10 = arith.constant 0 : index
    %12 = vector.load %arg5[%c0_9, %c0_10] : memref<1x32xf32, #tpu.memory_space<vmem>>, vector<1x32xf32>
    %13 = vector.broadcast %12 : vector<1x32xf32> to vector<16x32xf32>
    %14 = arith.addf %11, %13 : vector<16x32xf32>
    %cst_11 = arith.constant 0.000000e+00 : f32
    %15 = vector.broadcast %cst_11 : f32 to vector<16x32xf32>
    %16 = arith.maximumf %14, %15 : vector<16x32xf32>
    %c0_12 = arith.constant 0 : index
    %c0_13 = arith.constant 0 : index
    %17 = vector.load %arg6[%c0_12, %c0_13] : memref<1x32xbf16, #tpu.memory_space<vmem>>, vector<1x32xbf16>
    %18 = arith.truncf %16 : vector<16x32xf32> to vector<16x32xbf16>
    %cst_14 = arith.constant dense<0.000000e+00> : vector<1x16xf32>
    %19 = tpu.matmul %17, %18, %cst_14 {dimension_numbers = #tpu.dot_dimension_numbers<[1], [1], [0], [0], [0, 0, 1, 0], [], []>} : vector<1x32xbf16>, vector<16x32xbf16>, vector<1x16xf32> -> vector<1x16xf32>
    %c0_15 = arith.constant 0 : index
    %c0_16 = arith.constant 0 : index
    %20 = memref.load %arg7[%c0_15, %c0_16] : memref<1x1xf32, #tpu.memory_space<smem>>
    %21 = vector.broadcast %20 : f32 to vector<1x16xf32>
    %22 = arith.addf %19, %21 : vector<1x16xf32>
    %c0_17 = arith.constant 0 : index
    %c0_18 = arith.constant 0 : index
    %23 = vector.load %arg8[%c0_17, %c0_18] : memref<1x16xf32, #tpu.memory_space<vmem>>, vector<1x16xf32>
    tpu.vector_store %arg8[%c0_17, %c0_18], %22 {strides = array<i32>} : memref<1x16xf32, #tpu.memory_space<vmem>>, vector<1x16xf32>,
    return
  }
  func.func @transform_0(%arg0: i32) -> (i32, i32) {
    %c0_i32 = arith.constant 0 : i32
    %c0_i32_0 = arith.constant 0 : i32
    return %arg0, %c0_i32 : i32, i32
  }
  func.func @transform_1(%arg0: i32) -> (i32, i32) {
    %c0_i32 = arith.constant 0 : i32
    %c0_i32_0 = arith.constant 0 : i32
    %c0_i32_1 = arith.constant 0 : i32
    return %c0_i32, %c0_i32_0 : i32, i32
  }
  func.func @transform_2(%arg0: i32) -> (i32, i32) {
    %c0_i32 = arith.constant 0 : i32
    %c0_i32_0 = arith.constant 0 : i32
    %c0_i32_1 = arith.constant 0 : i32
    return %c0_i32, %c0_i32_0 : i32, i32
  }
  func.func @transform_3(%arg0: i32) -> (i32, i32) {
    %c0_i32 = arith.constant 0 : i32
    %c0_i32_0 = arith.constant 0 : i32
    %c0_i32_1 = arith.constant 0 : i32
    return %c0_i32, %c0_i32_0 : i32, i32
  }
  func.func @transform_4(%arg0: i32) -> (i32, i32) {
    %c0_i32 = arith.constant 0 : i32
    %c0_i32_0 = arith.constant 0 : i32
    %c0_i32_1 = arith.constant 0 : i32
    return %c0_i32, %c0_i32_0 : i32, i32
  }
  func.func @transform_5(%arg0: i32) -> (i32, i32) {
    %c0_i32 = arith.constant 0 : i32
    %c0_i32_0 = arith.constant 0 : i32
    %c0_i32_1 = arith.constant 0 : i32
    return %c0_i32, %c0_i32_0 : i32, i32
  }
  func.func @transform_6(%arg0: i32) -> (i32, i32) {
    %c0_i32 = arith.constant 0 : i32
    %c0_i32_0 = arith.constant 0 : i32
    %c0_i32_1 = arith.constant 0 : i32
    return %c0_i32, %c0_i32_0 : i32, i32
  }
  func.func @transform_7(%arg0: i32) -> (i32, i32) {
    %c0_i32 = arith.constant 0 : i32
    %c0_i32_0 = arith.constant 0 : i32
    return %c0_i32, %arg0 : i32, i32
  }
}

</mosaic_0001>

<llo_original>
// kernel: tpu_custom_call.1
$region0: #{tpu_custom_call.1}
  #allocation0 [shape = 'u32[]', space=smem, size = 0x4, offset = 0x4, fixed_abs, tag = 'smem constant byte address 0x4 - core index']
  #allocation1 [shape = 'u32[144,128]{1,0:T(1,128)}', space=vmem, size = 0x12000, scoped, tag = 'internal scratch']
  #allocation2 [shape = 'f32[1,1]{1,0:T(1,128)S(6)}', space=smem, size = 0x200, scoped, tag = 'scoped memory for tpu_custom_call.1']
  %s0 = inlined_call_operand.hbm [shape: f32[16,32], index: 0, kind: input, shape index: {}]
  %s1 = inlined_call_operand.hbm [shape: bf16[32,32], index: 1, kind: input, shape index: {}]
  %s2 = inlined_call_operand.vmem [shape: f32[1,32], index: 2, kind: input, shape index: {}]
  %s3 = inlined_call_operand.hbm [shape: bf16[32,32], index: 3, kind: input, shape index: {}]
  %s4 = inlined_call_operand.vmem [shape: f32[1,32], index: 4, kind: input, shape index: {}]
  %s5 = inlined_call_operand.vmem [shape: bf16[1,32], index: 5, kind: input, shape index: {}]
  %s6 = inlined_call_operand.<no memory space> [shape: f32[1,1], index: 6, kind: input, shape index: {}]
  %s7 = inlined_call_operand.hbm [shape: f32[1,16], index: 7, kind: output, shape index: {}]
  %s8 = sld [smem:[#allocation0]]
  $region50: #{tpu_custom_call.1} parent=0
    _
  %s10 = ssub.s32 1, %s8
  %s11 = scalar_select 0, %s10, %s8
  %12 = sst [smem:[#allocation2]] %s6
  $region1: #{tpu_custom_call.1} parent=0
    #allocation3 [shape = 'u8[8192]{0}', space=vmem, size = 0x2000, scoped, tag = 'input window, operand 0, single buffered']
    #allocation4 [shape = 's32[1]{0}', space=sflag, size = 0x4, scoped, tag = 'scoped memory for tpu_custom_call.1']
    #allocation5 [shape = 's32[1]{0}', space=sflag, size = 0x4, scoped, tag = 'scoped memory for tpu_custom_call.1']
    #allocation6 [shape = 'u8[8192]{0}', space=vmem, size = 0x2000, scoped, tag = 'input window, operand 1, single buffered']
    #allocation7 [shape = 's32[1]{0}', space=sflag, size = 0x4, scoped, tag = 'scoped memory for tpu_custom_call.1']
    #allocation8 [shape = 'u8[8192]{0}', space=vmem, size = 0x2000, scoped, tag = 'input window, operand 3, single buffered']
    #allocation9 [shape = 'u8[512]{0}', space=vmem, size = 0x400, scoped, tag = 'output window, operand 0, single buffered']
    %13 = vsyncpa [#allocation4], 0
    %14 = vsyncpa [#allocation7], 0
    %15 = vsyncpa [#allocation5], 0
    // Predicated region
    $region2: #{tpu_custom_call.1} parent=1 // pred_check
      _
    $region3: #{tpu_custom_call.1} parent=1 // pred_check_branch
      %17 = sbr.rel (0) target = $region5
    $region4: #{tpu_custom_call.1} parent=1 // pred_region
      %s19 = ssub.s32 256, 256
      %20 = vsyncadd [#allocation4], %s19
      %s21 = sshll.u32 [#allocation3], 4
      %s22 = int_to_ptr.vmem [resolvable:$true] %s21
      %27 = dma.hbm_to_vmem [thread:$0]  %s0, 256, %s22, [#allocation4], 128, 128, 8
    $region5: #{tpu_custom_call.1} parent=1 // pred_fallthru
      _
    // Predicated region
    $region6: #{tpu_custom_call.1} parent=1 // pred_check
      _
    $region7: #{tpu_custom_call.1} parent=1 // pred_check_branch
      %29 = sbr.rel (0) target = $region9
    $region8: #{tpu_custom_call.1} parent=1 // pred_region
      %s31 = ssub.s32 256, 256
      %32 = vsyncadd [#allocation7], %s31
      %s33 = sshll.u32 [#allocation6], 4
      %s34 = int_to_ptr.vmem [resolvable:$true] %s33
      %39 = dma.hbm_to_vmem [thread:$0]  %s1, 256, %s34, [#allocation7], 64, 64, 4
    $region9: #{tpu_custom_call.1} parent=1 // pred_fallthru
      _
    // Predicated region
    $region10: #{tpu_custom_call.1} parent=1 // pred_check
      _
    $region11: #{tpu_custom_call.1} parent=1 // pred_check_branch
      %41 = sbr.rel (0) target = $region13
    $region12: #{tpu_custom_call.1} parent=1 // pred_region
      _
    $region13: #{tpu_custom_call.1} parent=1 // pred_fallthru
      _
    // Predicated region
    $region14: #{tpu_custom_call.1} parent=1 // pred_check
      _
    $region15: #{tpu_custom_call.1} parent=1 // pred_check_branch
      %43 = sbr.rel (0) target = $region17
    $region16: #{tpu_custom_call.1} parent=1 // pred_region
      %s45 = ssub.s32 256, 256
      %46 = vsyncadd [#allocation7], %s45
      %s47 = sshll.u32 [#allocation8], 4
      %s48 = int_to_ptr.vmem [resolvable:$true] %s47
      %53 = dma.hbm_to_vmem [thread:$0]  %s3, 256, %s48, [#allocation7], 64, 64, 4
    $region17: #{tpu_custom_call.1} parent=1 // pred_fallthru
      _
    // Predicated region
    $region18: #{tpu_custom_call.1} parent=1 // pred_check
      _
    $region19: #{tpu_custom_call.1} parent=1 // pred_check_branch
      %55 = sbr.rel (0) target = $region21
    $region20: #{tpu_custom_call.1} parent=1 // pred_region
      _
    $region21: #{tpu_custom_call.1} parent=1 // pred_fallthru
      _
    // Predicated region
    $region22: #{tpu_custom_call.1} parent=1 // pred_check
      _
    $region23: #{tpu_custom_call.1} parent=1 // pred_check_branch
      %57 = sbr.rel (0) target = $region25
    $region24: #{tpu_custom_call.1} parent=1 // pred_region
      _
    $region25: #{tpu_custom_call.1} parent=1 // pred_fallthru
      _
    // Predicated region
    $region26: #{tpu_custom_call.1} parent=1 // pred_check
      _
    $region27: #{tpu_custom_call.1} parent=1 // pred_check_branch
      %59 = sbr.rel (0) target = $region29
    $region28: #{tpu_custom_call.1} parent=1 // pred_region
      _
    $region29: #{tpu_custom_call.1} parent=1 // pred_fallthru
      _
    // Predicated region
    $region30: #{tpu_custom_call.1} parent=1 // pred_check
      _
    $region31: #{tpu_custom_call.1} parent=1 // pred_check_branch
      %61 = sbr.rel (0) target = $region33
    $region32: #{tpu_custom_call.1} parent=1 // pred_region
      %62 = dma.done [#allocation4], 256
    $region33: #{tpu_custom_call.1} parent=1 // pred_fallthru
      _
    // Predicated region
    $region34: #{tpu_custom_call.1} parent=1 // pred_check
      _
    $region35: #{tpu_custom_call.1} parent=1 // pred_check_branch
      %64 = sbr.rel (0) target = $region37
    $region36: #{tpu_custom_call.1} parent=1 // pred_region
      %65 = dma.done [#allocation7], 256
    $region37: #{tpu_custom_call.1} parent=1 // pred_fallthru
      _
    // Predicated region
    $region38: #{tpu_custom_call.1} parent=1 // pred_check
      _
    $region39: #{tpu_custom_call.1} parent=1 // pred_check_branch
      %67 = sbr.rel (0) target = $region41
    $region40: #{tpu_custom_call.1} parent=1 // pred_region
      %68 = dma.done [#allocation7], 256
    $region41: #{tpu_custom_call.1} parent=1 // pred_fallthru
      _
    %v70 = vld [vmem:[#allocation3] sm:$0xff]
    %v71 = vld [vmem:[#allocation3 + $0x8] sm:$0xff]
    %v72 = vpack.c.bf16 %v71, %v70
    %v73 = vld [vmem:[#allocation6] sm:$0xf]
    %v74 = vld [vmem:[#allocation6 + $0x4] sm:$0xf]
    %v75 = vld [vmem:[#allocation6 + $0x8] sm:$0xf]
    %v76 = vld [vmem:[#allocation6 + $0xc] sm:$0xf]
    %v77 = vld [vmem:[%s2] sm:$0x1]
    %v79 = vlaneseq
    %v80 = vshrl.u32 %v79, 7
    %v81 = vsub.s32 0, %v80
    %v82 = vrot.slane %v77, %v81
    %v88 = vunpack.c.l.b16 %v73
    %v89 = vunpack.c.l.b16 %v74
    %v90 = vunpack.c.l.b16 %v75
    %v91 = vunpack.c.l.b16 %v76
    %v92 = vpack.c.b16 %v89, %v88
    %v93 = vpack.c.b16 %v91, %v90
    %vm96 = vcmask 261120
    %v98 = vsel %vm96, %v72, 0
    %100 = vmatprep.subr.bf16.mxu0 0
    %101 = vmatpush1.bf16.msra.mxu0 %v92
    %102 = vmatprep.subr.bf16.mxu0 0
    %103 = vmatpush1.bf16.msra.mxu0 %v93
    %104 = vmatprep.subr.bf16.mxu0 0
    %105 = vmatpush1.bf16.msra.mxu0 0
    %106 = vmatprep.subr.bf16.mxu0 0
    %107 = vmatpush1.bf16.msra.mxu0 0
    %108 = vmatprep.subr.bf16.mxu0 0
    %109 = vmatpush1.bf16.msra.mxu0 0
    %110 = vmatprep.subr.bf16.mxu0 0
    %111 = vmatpush1.bf16.msra.mxu0 0
    %112 = vmatprep.subr.bf16.mxu0 0
    %113 = vmatpush1.bf16.msra.mxu0 0
    %114 = vmatprep.subr.bf16.mxu0 0
    %115 = vmatpush1.bf16.msra.mxu0 0
    %116 = vmatprep.subr.bf16.mxu0 0
    %117 = vmatpush1.bf16.msra.mxu0 0
    %118 = vmatprep.subr.bf16.mxu0 0
    %119 = vmatpush1.bf16.msra.mxu0 0
    %120 = vmatprep.subr.bf16.mxu0 0
    %121 = vmatpush1.bf16.msra.mxu0 0
    %122 = vmatprep.subr.bf16.mxu0 0
    %123 = vmatpush1.bf16.msra.mxu0 0
    %124 = vmatprep.subr.bf16.mxu0 0
    %125 = vmatpush1.bf16.msra.mxu0 0
    %126 = vmatprep.subr.bf16.mxu0 0
    %127 = vmatpush1.bf16.msra.mxu0 0
    %128 = vmatprep.subr.bf16.mxu0 0
    %129 = vmatpush1.bf16.msra.mxu0 0
    %130 = vmatprep.subr.bf16.mxu0 0
    %131 = vmatpush1.bf16.msra.mxu0 0
    %132 = vmatprep.mubr.bf16.mxu0 0
    %133 = vmatmul.mubr.bf16.gmra.mrb[0].mxu0 %v98
    %v134 = vpop.f32.mrb[0].mxu0
    %v135 = vadd.f32 %v82, %v134
    %v136 = vpop.f32.mrb[0].mxu0
    %v137 = vpop.f32.mrb[0].mxu0
    %v138 = vadd.f32 %v82, %v137
    %v139 = vpop.f32.mrb[0].mxu0
    %140 = vdwg.mxu0
    %v141 = vmax.f32 %v135, 0.0
    %v142 = vmax.f32 %v138, 0.0
    %v143 = vpack.c.bf16 %v142, %v141
    %v144 = vld [vmem:[#allocation8] sm:$0xf]
    %v145 = vld [vmem:[#allocation8 + $0x4] sm:$0xf]
    %v146 = vld [vmem:[#allocation8 + $0x8] sm:$0xf]
    %v147 = vld [vmem:[#allocation8 + $0xc] sm:$0xf]
    %v148 = vld [vmem:[%s4] sm:$0x1]
    %v150 = vlaneseq
    %v151 = vshrl.u32 %v150, 7
    %v152 = vsub.s32 0, %v151
    %v153 = vrot.slane %v148, %v152
    %v159 = vunpack.c.l.b16 %v144
    %v160 = vunpack.c.l.b16 %v145
    %v161 = vunpack.c.l.b16 %v146
    %v162 = vunpack.c.l.b16 %v147
    %v163 = vpack.c.b16 %v160, %v159
    %v164 = vpack.c.b16 %v162, %v161
    %v168 = vsel %vm96, %v143, 0
    %170 = vmatprep.subr.bf16.mxu0 0
    %171 = vmatpush1.bf16.msra.mxu0 %v163
    %172 = vmatprep.subr.bf16.mxu0 0
    %173 = vmatpush1.bf16.msra.mxu0 %v164
    %174 = vmatprep.subr.bf16.mxu0 0
    %175 = vmatpush1.bf16.msra.mxu0 0
    %176 = vmatprep.subr.bf16.mxu0 0
    %177 = vmatpush1.bf16.msra.mxu0 0
    %178 = vmatprep.subr.bf16.mxu0 0
    %179 = vmatpush1.bf16.msra.mxu0 0
    %180 = vmatprep.subr.bf16.mxu0 0
    %181 = vmatpush1.bf16.msra.mxu0 0
    %182 = vmatprep.subr.bf16.mxu0 0
    %183 = vmatpush1.bf16.msra.mxu0 0
    %184 = vmatprep.subr.bf16.mxu0 0
    %185 = vmatpush1.bf16.msra.mxu0 0
    %186 = vmatprep.subr.bf16.mxu0 0
    %187 = vmatpush1.bf16.msra.mxu0 0
    %188 = vmatprep.subr.bf16.mxu0 0
    %189 = vmatpush1.bf16.msra.mxu0 0
    %190 = vmatprep.subr.bf16.mxu0 0
    %191 = vmatpush1.bf16.msra.mxu0 0
    %192 = vmatprep.subr.bf16.mxu0 0
    %193 = vmatpush1.bf16.msra.mxu0 0
    %194 = vmatprep.subr.bf16.mxu0 0
    %195 = vmatpush1.bf16.msra.mxu0 0
    %196 = vmatprep.subr.bf16.mxu0 0
    %197 = vmatpush1.bf16.msra.mxu0 0
    %198 = vmatprep.subr.bf16.mxu0 0
    %199 = vmatpush1.bf16.msra.mxu0 0
    %200 = vmatprep.subr.bf16.mxu0 0
    %201 = vmatpush1.bf16.msra.mxu0 0
    %202 = vmatprep.mubr.bf16.mxu0 0
    %203 = vmatmul.mubr.bf16.gmra.mrb[0].mxu0 %v168
    %v204 = vpop.f32.mrb[0].mxu0
    %v205 = vadd.f32 %v153, %v204
    %v206 = vpop.f32.mrb[0].mxu0
    %v207 = vpop.f32.mrb[0].mxu0
    %v208 = vadd.f32 %v153, %v207
    %v209 = vpop.f32.mrb[0].mxu0
    %210 = vdwg.mxu0
    %v211 = vmax.f32 %v205, 0.0
    %v212 = vmax.f32 %v208, 0.0
    %v213 = vld [vmem:[%s5] sm:$0x1]
    %v214 = vpack.c.bf16 %v212, %v211
    %s215 = sld [smem:[#allocation2]]
    %v216 = vstv %s215
    %v218 = vsel %vm96, %v213, 0
    %v221 = vsel %vm96, %v214, 0
    %223 = vmatprep.subr.bf16.mxu0 0
    %224 = vmatpush1.bf16.xpose.msra.mxu0 %v221
    %225 = vmatprep.subr.bf16.mxu0 0
    %226 = vmatpush1.bf16.xpose.msra.mxu0 0
    %227 = vmatprep.subr.bf16.mxu0 0
    %228 = vmatpush1.bf16.xpose.msra.mxu0 0
    %229 = vmatprep.subr.bf16.mxu0 0
    %230 = vmatpush1.bf16.xpose.msra.mxu0 0
    %231 = vmatprep.subr.bf16.mxu0 0
    %232 = vmatpush1.bf16.xpose.msra.mxu0 0
    %233 = vmatprep.subr.bf16.mxu0 0
    %234 = vmatpush1.bf16.xpose.msra.mxu0 0
    %235 = vmatprep.subr.bf16.mxu0 0
    %236 = vmatpush1.bf16.xpose.msra.mxu0 0
    %237 = vmatprep.subr.bf16.mxu0 0
    %238 = vmatpush1.bf16.xpose.msra.mxu0 0
    %239 = vmatprep.subr.bf16.mxu0 0
    %240 = vmatpush1.bf16.xpose.msra.mxu0 0
    %241 = vmatprep.subr.bf16.mxu0 0
    %242 = vmatpush1.bf16.xpose.msra.mxu0 0
    %243 = vmatprep.subr.bf16.mxu0 0
    %244 = vmatpush1.bf16.xpose.msra.mxu0 0
    %245 = vmatprep.subr.bf16.mxu0 0
    %246 = vmatpush1.bf16.xpose.msra.mxu0 0
    %247 = vmatprep.subr.bf16.mxu0 0
    %248 = vmatpush1.bf16.xpose.msra.mxu0 0
    %249 = vmatprep.subr.bf16.mxu0 0
    %250 = vmatpush1.bf16.xpose.msra.mxu0 0
    %251 = vmatprep.subr.bf16.mxu0 0
    %252 = vmatpush1.bf16.xpose.msra.mxu0 0
    %253 = vmatprep.subr.bf16.mxu0 0
    %254 = vmatpush1.bf16.xpose.msra.mxu0 0
    %255 = vmatprep.mubr.bf16.mxu0 0
    %256 = vmatmul.mubr.bf16.gmra.mrb[0].mxu0 %v218
    %v257 = vpop.f32.mrb[0].mxu0
    %v258 = vadd.f32 %v216, %v257
    %v259 = vpop.f32.mrb[0].mxu0
    %v260 = vpop.f32.mrb[0].mxu0
    %v261 = vpop.f32.mrb[0].mxu0
    %262 = vdwg.mxu0
    %vm263 = vcmask 122880
    %264 = vst.msk [vmem:[#allocation9] sm:$0x1] %vm263, %v258
    // Predicated region
    $region42: #{tpu_custom_call.1} parent=1 // pred_check
      _
    $region43: #{tpu_custom_call.1} parent=1 // pred_check_branch
      %266 = sbr.rel (0) target = $region45
    $region44: #{tpu_custom_call.1} parent=1 // pred_region
      %s268 = ssub.s32 16, 16
      %269 = vsyncadd [#allocation5], %s268
      %s271 = sshll.u32 [#allocation9], 4
      %s272 = int_to_ptr.vmem [resolvable:$true] %s271
      %274 = dma.vmem_to_hbm [thread:$0]  %s272, 16, %s7, [#allocation5]
    $region45: #{tpu_custom_call.1} parent=1 // pred_fallthru
      _
    // Predicated region
    $region46: #{tpu_custom_call.1} parent=1 // pred_check
      _
    $region47: #{tpu_custom_call.1} parent=1 // pred_check_branch
      %276 = sbr.rel (0) target = $region49
    $region48: #{tpu_custom_call.1} parent=1 // pred_region
      %277 = dma.done [#allocation5], 16
    $region49: #{tpu_custom_call.1} parent=1 // pred_fallthru
      _
    %278 = vsyncpa [#allocation4], 1
    %279 = vsyncpa [#allocation7], 1
    %280 = vsyncpa [#allocation5], 1

// kernel: tpu_custom_call.1
$region0: #{tpu_custom_call.1}
  #allocation0 [shape = 'u32[]', space=smem, size = 0x4, offset = 0x4, fixed_abs, tag = 'smem constant byte address 0x4 - core index']
  #allocation1 [shape = 'u32[144,128]{1,0:T(1,128)}', space=vmem, size = 0x12000, scoped, tag = 'internal scratch']
  #allocation2 [shape = 'f32[1,1]{1,0:T(1,128)S(6)}', space=smem, size = 0x200, scoped, tag = 'scoped memory for tpu_custom_call.1']
  %s0 = inlined_call_operand.hbm [shape: f32[16,32], index: 0, kind: input, shape index: {}]
  %s1 = inlined_call_operand.hbm [shape: bf16[32,32], index: 1, kind: input, shape index: {}]
  %s2 = inlined_call_operand.vmem [shape: f32[1,32], index: 2, kind: input, shape index: {}]
  %s3 = inlined_call_operand.hbm [shape: bf16[32,32], index: 3, kind: input, shape index: {}]
  %s4 = inlined_call_operand.vmem [shape: f32[1,32], index: 4, kind: input, shape index: {}]
  %s5 = inlined_call_operand.vmem [shape: bf16[1,32], index: 5, kind: input, shape index: {}]
  %s6 = inlined_call_operand.<no memory space> [shape: f32[1,1], index: 6, kind: input, shape index: {}]
  %s7 = inlined_call_operand.hbm [shape: f32[1,16], index: 7, kind: output, shape index: {}]
  %s8 = sld [smem:[#allocation0]]
  $region50: #{tpu_custom_call.1} parent=0
    _
  %s10 = ssub.s32 1, %s8
  %s11 = scalar_select 0, %s10, %s8
  %12 = sst [smem:[#allocation2]] %s6
  $region1: #{tpu_custom_call.1} parent=0
    #allocation3 [shape = 'u8[8192]{0}', space=vmem, size = 0x2000, scoped, tag = 'input window, operand 0, single buffered']
    #allocation4 [shape = 's32[1]{0}', space=sflag, size = 0x4, scoped, tag = 'scoped memory for tpu_custom_call.1']
    #allocation5 [shape = 's32[1]{0}', space=sflag, size = 0x4, scoped, tag = 'scoped memory for tpu_custom_call.1']
    #allocation6 [shape = 'u8[8192]{0}', space=vmem, size = 0x2000, scoped, tag = 'input window, operand 1, single buffered']
    #allocation7 [shape = 's32[1]{0}', space=sflag, size = 0x4, scoped, tag = 'scoped memory for tpu_custom_call.1']
    #allocation8 [shape = 'u8[8192]{0}', space=vmem, size = 0x2000, scoped, tag = 'input window, operand 3, single buffered']
    #allocation9 [shape = 'u8[512]{0}', space=vmem, size = 0x400, scoped, tag = 'output window, operand 0, single buffered']
    %13 = vsyncpa [#allocation4], 0
    %14 = vsyncpa [#allocation7], 0
    %15 = vsyncpa [#allocation5], 0
    // Predicated region
    $region2: #{tpu_custom_call.1} parent=1 // pred_check
      _
    $region3: #{tpu_custom_call.1} parent=1 // pred_check_branch
      %17 = sbr.rel (0) target = $region5
    $region4: #{tpu_custom_call.1} parent=1 // pred_region
      %s19 = ssub.s32 256, 256
      %20 = vsyncadd [#allocation4], %s19
      %s21 = sshll.u32 [#allocation3], 4
      %s22 = int_to_ptr.vmem [resolvable:$true] %s21
      %27 = dma.hbm_to_vmem [thread:$0]  %s0, 256, %s22, [#allocation4], 128, 128, 8
    $region5: #{tpu_custom_call.1} parent=1 // pred_fallthru
      _
    // Predicated region
    $region6: #{tpu_custom_call.1} parent=1 // pred_check
      _
    $region7: #{tpu_custom_call.1} parent=1 // pred_check_branch
      %29 = sbr.rel (0) target = $region9
    $region8: #{tpu_custom_call.1} parent=1 // pred_region
      %s31 = ssub.s32 256, 256
      %32 = vsyncadd [#allocation7], %s31
      %s33 = sshll.u32 [#allocation6], 4
      %s34 = int_to_ptr.vmem [resolvable:$true] %s33
      %39 = dma.hbm_to_vmem [thread:$0]  %s1, 256, %s34, [#allocation7], 64, 64, 4
    $region9: #{tpu_custom_call.1} parent=1 // pred_fallthru
      _
    // Predicated region
    $region10: #{tpu_custom_call.1} parent=1 // pred_check
      _
    $region11: #{tpu_custom_call.1} parent=1 // pred_check_branch
      %41 = sbr.rel (0) target = $region13
    $region12: #{tpu_custom_call.1} parent=1 // pred_region
      _
    $region13: #{tpu_custom_call.1} parent=1 // pred_fallthru
      _
    // Predicated region
    $region14: #{tpu_custom_call.1} parent=1 // pred_check
      _
    $region15: #{tpu_custom_call.1} parent=1 // pred_check_branch
      %43 = sbr.rel (0) target = $region17
    $region16: #{tpu_custom_call.1} parent=1 // pred_region
      %s45 = ssub.s32 256, 256
      %46 = vsyncadd [#allocation7], %s45
      %s47 = sshll.u32 [#allocation8], 4
      %s48 = int_to_ptr.vmem [resolvable:$true] %s47
      %53 = dma.hbm_to_vmem [thread:$0]  %s3, 256, %s48, [#allocation7], 64, 64, 4
    $region17: #{tpu_custom_call.1} parent=1 // pred_fallthru
      _
    // Predicated region
    $region18: #{tpu_custom_call.1} parent=1 // pred_check
      _
    $region19: #{tpu_custom_call.1} parent=1 // pred_check_branch
      %55 = sbr.rel (0) target = $region21
    $region20: #{tpu_custom_call.1} parent=1 // pred_region
      _
    $region21: #{tpu_custom_call.1} parent=1 // pred_fallthru
      _
    // Predicated region
    $region22: #{tpu_custom_call.1} parent=1 // pred_check
      _
    $region23: #{tpu_custom_call.1} parent=1 // pred_check_branch
      %57 = sbr.rel (0) target = $region25
    $region24: #{tpu_custom_call.1} parent=1 // pred_region
      _
    $region25: #{tpu_custom_call.1} parent=1 // pred_fallthru
      _
    // Predicated region
    $region26: #{tpu_custom_call.1} parent=1 // pred_check
      _
    $region27: #{tpu_custom_call.1} parent=1 // pred_check_branch
      %59 = sbr.rel (0) target = $region29
    $region28: #{tpu_custom_call.1} parent=1 // pred_region
      _
    $region29: #{tpu_custom_call.1} parent=1 // pred_fallthru
      _
    // Predicated region
    $region30: #{tpu_custom_call.1} parent=1 // pred_check
      _
    $region31: #{tpu_custom_call.1} parent=1 // pred_check_branch
      %61 = sbr.rel (0) target = $region33
    $region32: #{tpu_custom_call.1} parent=1 // pred_region
      %62 = dma.done [#allocation4], 256
    $region33: #{tpu_custom_call.1} parent=1 // pred_fallthru
      _
    // Predicated region
    $region34: #{tpu_custom_call.1} parent=1 // pred_check
      _
    $region35: #{tpu_custom_call.1} parent=1 // pred_check_branch
      %64 = sbr.rel (0) target = $region37
    $region36: #{tpu_custom_call.1} parent=1 // pred_region
      %65 = dma.done [#allocation7], 256
    $region37: #{tpu_custom_call.1} parent=1 // pred_fallthru
      _
    // Predicated region
    $region38: #{tpu_custom_call.1} parent=1 // pred_check
      _
    $region39: #{tpu_custom_call.1} parent=1 // pred_check_branch
      %67 = sbr.rel (0) target = $region41
    $region40: #{tpu_custom_call.1} parent=1 // pred_region
      %68 = dma.done [#allocation7], 256
    $region41: #{tpu_custom_call.1} parent=1 // pred_fallthru
      _
    %v70 = vld [vmem:[#allocation3] sm:$0xff]
    %v71 = vld [vmem:[#allocation3 + $0x8] sm:$0xff]
    %v72 = vpack.c.bf16 %v71, %v70
    %v73 = vld [vmem:[#allocation6] sm:$0xf]
    %v74 = vld [vmem:[#allocation6 + $0x4] sm:$0xf]
    %v75 = vld [vmem:[#allocation6 + $0x8] sm:$0xf]
    %v76 = vld [vmem:[#allocation6 + $0xc] sm:$0xf]
    %v77 = vld [vmem:[%s2] sm:$0x1]
    %v79 = vlaneseq
    %v80 = vshrl.u32 %v79, 7
    %v81 = vsub.s32 0, %v80
    %v82 = vrot.slane %v77, %v81
    %v88 = vunpack.c.l.b16 %v73
    %v89 = vunpack.c.l.b16 %v74
    %v90 = vunpack.c.l.b16 %v75
    %v91 = vunpack.c.l.b16 %v76
    %v92 = vpack.c.b16 %v89, %v88
    %v93 = vpack.c.b16 %v91, %v90
    %vm96 = vcmask 261120
    %v98 = vsel %vm96, %v72, 0
    %100 = vmatprep.subr.bf16.mxu0 0
    %101 = vmatpush1.bf16.msra.mxu0 %v92
    %102 = vmatprep.subr.bf16.mxu0 0
    %103 = vmatpush1.bf16.msra.mxu0 %v93
    %104 = vmatprep.subr.bf16.mxu0 0
    %105 = vmatpush1.bf16.msra.mxu0 0
    %106 = vmatprep.subr.bf16.mxu0 0
    %107 = vmatpush1.bf16.msra.mxu0 0
    %108 = vmatprep.subr.bf16.mxu0 0
    %109 = vmatpush1.bf16.msra.mxu0 0
    %110 = vmatprep.subr.bf16.mxu0 0
    %111 = vmatpush1.bf16.msra.mxu0 0
    %112 = vmatprep.subr.bf16.mxu0 0
    %113 = vmatpush1.bf16.msra.mxu0 0
    %114 = vmatprep.subr.bf16.mxu0 0
    %115 = vmatpush1.bf16.msra.mxu0 0
    %116 = vmatprep.subr.bf16.mxu0 0
    %117 = vmatpush1.bf16.msra.mxu0 0
    %118 = vmatprep.subr.bf16.mxu0 0
    %119 = vmatpush1.bf16.msra.mxu0 0
    %120 = vmatprep.subr.bf16.mxu0 0
    %121 = vmatpush1.bf16.msra.mxu0 0
    %122 = vmatprep.subr.bf16.mxu0 0
    %123 = vmatpush1.bf16.msra.mxu0 0
    %124 = vmatprep.subr.bf16.mxu0 0
    %125 = vmatpush1.bf16.msra.mxu0 0
    %126 = vmatprep.subr.bf16.mxu0 0
    %127 = vmatpush1.bf16.msra.mxu0 0
    %128 = vmatprep.subr.bf16.mxu0 0
    %129 = vmatpush1.bf16.msra.mxu0 0
    %130 = vmatprep.subr.bf16.mxu0 0
    %131 = vmatpush1.bf16.msra.mxu0 0
    %132 = vmatprep.mubr.bf16.mxu0 0
    %133 = vmatmul.mubr.bf16.gmra.mrb[0].mxu0 %v98
    %v134 = vpop.f32.mrb[0].mxu0
    %v135 = vadd.f32 %v82, %v134
    %v136 = vpop.f32.mrb[0].mxu0
    %v137 = vpop.f32.mrb[0].mxu0
    %v138 = vadd.f32 %v82, %v137
    %v139 = vpop.f32.mrb[0].mxu0
    %140 = vdwg.mxu0
    %v141 = vmax.f32 %v135, 0.0
    %v142 = vmax.f32 %v138, 0.0
    %v143 = vpack.c.bf16 %v142, %v141
    %v144 = vld [vmem:[#allocation8] sm:$0xf]
    %v145 = vld [vmem:[#allocation8 + $0x4] sm:$0xf]
    %v146 = vld [vmem:[#allocation8 + $0x8] sm:$0xf]
    %v147 = vld [vmem:[#allocation8 + $0xc] sm:$0xf]
    %v148 = vld [vmem:[%s4] sm:$0x1]
    %v150 = vlaneseq
    %v151 = vshrl.u32 %v150, 7
    %v152 = vsub.s32 0, %v151
    %v153 = vrot.slane %v148, %v152
    %v159 = vunpack.c.l.b16 %v144
    %v160 = vunpack.c.l.b16 %v145
    %v161 = vunpack.c.l.b16 %v146
    %v162 = vunpack.c.l.b16 %v147
    %v163 = vpack.c.b16 %v160, %v159
    %v164 = vpack.c.b16 %v162, %v161
    %v168 = vsel %vm96, %v143, 0
    %170 = vmatprep.subr.bf16.mxu0 0
    %171 = vmatpush1.bf16.msra.mxu0 %v163
    %172 = vmatprep.subr.bf16.mxu0 0
    %173 = vmatpush1.bf16.msra.mxu0 %v164
    %174 = vmatprep.subr.bf16.mxu0 0
    %175 = vmatpush1.bf16.msra.mxu0 0
    %176 = vmatprep.subr.bf16.mxu0 0
    %177 = vmatpush1.bf16.msra.mxu0 0
    %178 = vmatprep.subr.bf16.mxu0 0
    %179 = vmatpush1.bf16.msra.mxu0 0
    %180 = vmatprep.subr.bf16.mxu0 0
    %181 = vmatpush1.bf16.msra.mxu0 0
    %182 = vmatprep.subr.bf16.mxu0 0
    %183 = vmatpush1.bf16.msra.mxu0 0
    %184 = vmatprep.subr.bf16.mxu0 0
    %185 = vmatpush1.bf16.msra.mxu0 0
    %186 = vmatprep.subr.bf16.mxu0 0
    %187 = vmatpush1.bf16.msra.mxu0 0
    %188 = vmatprep.subr.bf16.mxu0 0
    %189 = vmatpush1.bf16.msra.mxu0 0
    %190 = vmatprep.subr.bf16.mxu0 0
    %191 = vmatpush1.bf16.msra.mxu0 0
    %192 = vmatprep.subr.bf16.mxu0 0
    %193 = vmatpush1.bf16.msra.mxu0 0
    %194 = vmatprep.subr.bf16.mxu0 0
    %195 = vmatpush1.bf16.msra.mxu0 0
    %196 = vmatprep.subr.bf16.mxu0 0
    %197 = vmatpush1.bf16.msra.mxu0 0
    %198 = vmatprep.subr.bf16.mxu0 0
    %199 = vmatpush1.bf16.msra.mxu0 0
    %200 = vmatprep.subr.bf16.mxu0 0
    %201 = vmatpush1.bf16.msra.mxu0 0
    %202 = vmatprep.mubr.bf16.mxu0 0
    %203 = vmatmul.mubr.bf16.gmra.mrb[0].mxu0 %v168
    %v204 = vpop.f32.mrb[0].mxu0
    %v205 = vadd.f32 %v153, %v204
    %v206 = vpop.f32.mrb[0].mxu0
    %v207 = vpop.f32.mrb[0].mxu0
    %v208 = vadd.f32 %v153, %v207
    %v209 = vpop.f32.mrb[0].mxu0
    %210 = vdwg.mxu0
    %v211 = vmax.f32 %v205, 0.0
    %v212 = vmax.f32 %v208, 0.0
    %v213 = vld [vmem:[%s5] sm:$0x1]
    %v214 = vpack.c.bf16 %v212, %v211
    %s215 = sld [smem:[#allocation2]]
    %v216 = vstv %s215
    %v218 = vsel %vm96, %v213, 0
    %v221 = vsel %vm96, %v214, 0
    %223 = vmatprep.subr.bf16.mxu0 0
    %224 = vmatpush1.bf16.xpose.msra.mxu0 %v221
    %225 = vmatprep.subr.bf16.mxu0 0
    %226 = vmatpush1.bf16.xpose.msra.mxu0 0
    %227 = vmatprep.subr.bf16.mxu0 0
    %228 = vmatpush1.bf16.xpose.msra.mxu0 0
    %229 = vmatprep.subr.bf16.mxu0 0
    %230 = vmatpush1.bf16.xpose.msra.mxu0 0
    %231 = vmatprep.subr.bf16.mxu0 0
    %232 = vmatpush1.bf16.xpose.msra.mxu0 0
    %233 = vmatprep.subr.bf16.mxu0 0
    %234 = vmatpush1.bf16.xpose.msra.mxu0 0
    %235 = vmatprep.subr.bf16.mxu0 0
    %236 = vmatpush1.bf16.xpose.msra.mxu0 0
    %237 = vmatprep.subr.bf16.mxu0 0
    %238 = vmatpush1.bf16.xpose.msra.mxu0 0
    %239 = vmatprep.subr.bf16.mxu0 0
    %240 = vmatpush1.bf16.xpose.msra.mxu0 0
    %241 = vmatprep.subr.bf16.mxu0 0
    %242 = vmatpush1.bf16.xpose.msra.mxu0 0
    %243 = vmatprep.subr.bf16.mxu0 0
    %244 = vmatpush1.bf16.xpose.msra.mxu0 0
    %245 = vmatprep.subr.bf16.mxu0 0
    %246 = vmatpush1.bf16.xpose.msra.mxu0 0
    %247 = vmatprep.subr.bf16.mxu0 0
    %248 = vmatpush1.bf16.xpose.msra.mxu0 0
    %249 = vmatprep.subr.bf16.mxu0 0
    %250 = vmatpush1.bf16.xpose.msra.mxu0 0
    %251 = vmatprep.subr.bf16.mxu0 0
    %252 = vmatpush1.bf16.xpose.msra.mxu0 0
    %253 = vmatprep.subr.bf16.mxu0 0
    %254 = vmatpush1.bf16.xpose.msra.mxu0 0
    %255 = vmatprep.mubr.bf16.mxu0 0
    %256 = vmatmul.mubr.bf16.gmra.mrb[0].mxu0 %v218
    %v257 = vpop.f32.mrb[0].mxu0
    %v258 = vadd.f32 %v216, %v257
    %v259 = vpop.f32.mrb[0].mxu0
    %v260 = vpop.f32.mrb[0].mxu0
    %v261 = vpop.f32.mrb[0].mxu0
    %262 = vdwg.mxu0
    %vm263 = vcmask 122880
    %264 = vst.msk [vmem:[#allocation9] sm:$0x1] %vm263, %v258
    // Predicated region
    $region42: #{tpu_custom_call.1} parent=1 // pred_check
      _
    $region43: #{tpu_custom_call.1} parent=1 // pred_check_branch
      %266 = sbr.rel (0) target = $region45
    $region44: #{tpu_custom_call.1} parent=1 // pred_region
      %s268 = ssub.s32 16, 16
      %269 = vsyncadd [#allocation5], %s268
      %s271 = sshll.u32 [#allocation9], 4
      %s272 = int_to_ptr.vmem [resolvable:$true] %s271
      %274 = dma.vmem_to_hbm [thread:$0]  %s272, 16, %s7, [#allocation5]
    $region45: #{tpu_custom_call.1} parent=1 // pred_fallthru
      _
    // Predicated region
    $region46: #{tpu_custom_call.1} parent=1 // pred_check
      _
    $region47: #{tpu_custom_call.1} parent=1 // pred_check_branch
      %276 = sbr.rel (0) target = $region49
    $region48: #{tpu_custom_call.1} parent=1 // pred_region
      %277 = dma.done [#allocation5], 16
    $region49: #{tpu_custom_call.1} parent=1 // pred_fallthru
      _
    %278 = vsyncpa [#allocation4], 1
    %279 = vsyncpa [#allocation7], 1
    %280 = vsyncpa [#allocation5], 1

</llo_original>
